<compile_context>
chip_gen: v7x
topology: tpu7x:2x2x1
jax: 0.10.0
libtpu: 0.0.40
codegen_flags: <defaults>
</compile_context>

<pallas_src>
import jax
import jax.numpy as jnp
from jax.experimental import pallas as pl
from jax.experimental.pallas import tpu as pltpu


def _round_up(x, m):
    return ((x + m - 1) // m) * m


def _decoder_kernel(lat_ref, z_ref, w1l_ref, w1z_ref, b1_ref,
                    w2_ref, b2_ref, w3_ref, b3_ref, o_ref):
    # lat_ref: (TB, latent_dim)   z_ref: (TB, n_classes)
    # w1l_ref: (latent_dim, 128)  w1z_ref: (n_classes, 128)  b1_ref: (1, 128)
    # w2_ref:  (128, 256)         b2_ref: (1, 256)
    # w3_ref:  (256, n_pix_pad)   b3_ref: (1, n_pix_pad)
    # o_ref:   (TB, n_pix_pad)
    h1 = (jnp.dot(lat_ref[...], w1l_ref[...], preferred_element_type=jnp.float32)
          + jnp.dot(z_ref[...], w1z_ref[...], preferred_element_type=jnp.float32)
          + b1_ref[...])
    h1 = jnp.maximum(h1, 0.0)

    h2 = jnp.dot(h1, w2_ref[...], preferred_element_type=jnp.float32) + b2_ref[...]
    h2 = jnp.maximum(h2, 0.0)

    h3 = jnp.dot(h2, w3_ref[...], preferred_element_type=jnp.float32) + b3_ref[...]

    o_ref[...] = jax.nn.sigmoid(h3).astype(o_ref.dtype)


def mlp_conditional_decoder(latent_params, z, params, slen=28):
    """Pallas forward of MLPConditionalDecoder.

    latent_params: (B, latent_dim) f32
    z:             (B, n_classes)  f32
    params: dict with w1 (latent_dim+n_classes, 128), b1 (128,),
            w2 (128, 256), b2 (256,), w3 (256, slen*slen), b3 (slen*slen,)
    returns: (B, slen, slen) f32
    """
    B, latent_dim = latent_params.shape
    n_classes = z.shape[1]
    n_pix = slen * slen
    n_pix_pad = _round_up(n_pix, 128)          # 784 -> 896 (7 * 128)

    # --- parameter prep (concat elimination + lane padding) -----------------
    w1 = params["w1"].astype(jnp.float32)
    w1_lat = w1[:latent_dim]                   # (latent_dim, 128)
    w1_z = w1[latent_dim:]                     # (n_classes, 128)
    b1 = params["b1"].reshape(1, -1).astype(jnp.float32)
    w2 = params["w2"].astype(jnp.float32)
    b2 = params["b2"].reshape(1, -1).astype(jnp.float32)
    lane_pad = n_pix_pad - n_pix
    w3 = jnp.pad(params["w3"].astype(jnp.float32), ((0, 0), (0, lane_pad)))
    b3 = jnp.pad(params["b3"].reshape(1, -1).astype(jnp.float32),
                 ((0, 0), (0, lane_pad)))

    # --- batch tiling --------------------------------------------------------
    TB = min(256, _round_up(B, 8))             # sized for v7x VMEM / MXU rows
    B_pad = _round_up(B, TB)
    if B_pad != B:
        latent_params = jnp.pad(latent_params, ((0, B_pad - B), (0, 0)))
        z = jnp.pad(z, ((0, B_pad - B), (0, 0)))
    grid = (B_pad // TB,)

    row_block = lambda d: pl.BlockSpec((TB, d), lambda i: (i, 0))
    # Weights/biases: full-array blocks with constant index_map -> stay
    # resident in VMEM across grid steps (no re-DMA).
    pinned = lambda shape: pl.BlockSpec(shape, lambda i: (0, 0))

    cost = pl.CostEstimate(
        flops=2 * B_pad * (latent_dim * 128 + n_classes * 128
                           + 128 * 256 + 256 * n_pix_pad),
        transcendentals=B_pad * n_pix_pad,
        bytes_accessed=4 * (w1.size + b1.size + w2.size + b2.size
                            + w3.size + b3.size
                            + B_pad * (latent_dim + n_classes + n_pix_pad)),
    )

    out = pl.pallas_call(
        _decoder_kernel,
        out_shape=jax.ShapeDtypeStruct((B_pad, n_pix_pad), jnp.float32),
        grid=grid,
        in_specs=[
            row_block(latent_dim),             # latent_params
            row_block(n_classes),              # z
            pinned(w1_lat.shape), pinned(w1_z.shape), pinned(b1.shape),
            pinned(w2.shape), pinned(b2.shape),
            pinned(w3.shape), pinned(b3.shape),
        ],
        out_specs=row_block(n_pix_pad),
        compiler_params=pltpu.CompilerParams(
            dimension_semantics=("parallel",)),
        cost_estimate=cost,
    )(latent_params, z, w1_lat, w1_z, b1, w2, b2, w3, b3)

    return out[:B, :n_pix].reshape(B, slen, slen)


def init_params(key, latent_dim=5, n_classes=10, slen=28):
    """Deterministic synthetic parameters (nn.Linear, stored as (in, out))."""
    d_in = latent_dim + n_classes
    n_pix = slen * slen
    keys = jax.random.split(key, 6)

    def linear(kw, kb, fan_in, fan_out):
        bound = 1.0 / jnp.sqrt(jnp.float32(fan_in))
        w = jax.random.uniform(kw, (fan_in, fan_out), jnp.float32, -bound, bound)
        b = jax.random.uniform(kb, (fan_out,), jnp.float32, -bound, bound)
        return w, b

    w1, b1 = linear(keys[0], keys[1], d_in, 128)
    w2, b2 = linear(keys[2], keys[3], 128, 256)
    w3, b3 = linear(keys[4], keys[5], 256, n_pix)
    return {"w1": w1, "b1": b1, "w2": w2, "b2": b2, "w3": w3, "b3": b3}


if __name__ == "__main__":
    latent_dim, n_classes, slen = 5, 10, 28
    batch = 8

    key = jax.random.PRNGKey(0)
    k_lat, k_z, k_par = jax.random.split(key, 3)

    latent_params = jax.random.normal(k_lat, (batch, latent_dim), jnp.float32)
    labels = jax.random.randint(k_z, (batch,), 0, n_classes)
    z = jax.nn.one_hot(labels, n_classes, dtype=jnp.float32)

    params = init_params(k_par, latent_dim, n_classes, slen)

    image_mean = mlp_conditional_decoder(latent_params, z, params, slen=slen)
    image_mean = jax.block_until_ready(image_mean)

    # sanity checks vs reference pure-JAX forward
    h = jnp.concatenate([latent_params, z], axis=1)
    ref = jax.nn.relu(h @ params["w1"] + params["b1"])
    ref = jax.nn.relu(ref @ params["w2"] + params["b2"])
    ref = jax.nn.sigmoid(ref @ params["w3"] + params["b3"]).reshape(batch, slen, slen)

    assert image_mean.shape == (batch, slen, slen)
    assert jnp.allclose(image_mean, ref, atol=1e-5, rtol=1e-5)
    print("KERNEL_OK")
</pallas_src>

<mosaic_0001>
module attributes {stable_mosaic.version = 11 : i64} {
  func.func @_decoder_kernel(%arg0: i32, %arg1: memref<8x5xf32, #tpu.memory_space<vmem>>, %arg2: memref<8x10xf32, #tpu.memory_space<vmem>>, %arg3: memref<5x128xf32, #tpu.memory_space<vmem>>, %arg4: memref<10x128xf32, #tpu.memory_space<vmem>>, %arg5: memref<1x128xf32, #tpu.memory_space<vmem>>, %arg6: memref<128x256xf32, #tpu.memory_space<vmem>>, %arg7: memref<1x256xf32, #tpu.memory_space<vmem>>, %arg8: memref<256x896xf32, #tpu.memory_space<vmem>>, %arg9: memref<1x896xf32, #tpu.memory_space<vmem>>, %arg10: memref<8x896xf32, #tpu.memory_space<vmem>>) attributes {dimension_semantics = [#tpu.dimension_semantics<parallel>], iteration_bounds = array<i64: 1>, scalar_prefetch = 0 : i64, scratch_operands = 0 : i64, tpu.core_type = #tpu.core_type<tc>, window_params = [{transform_indices = @transform_0, window_bounds = array<i64: 8, 5>}, {transform_indices = @transform_1, window_bounds = array<i64: 8, 10>}, {pipeline_mode = #tpu.pipeline_mode<synchronous>, transform_indices = @transform_2, window_bounds = array<i64: 5, 128>}, {pipeline_mode = #tpu.pipeline_mode<synchronous>, transform_indices = @transform_3, window_bounds = array<i64: 10, 128>}, {pipeline_mode = #tpu.pipeline_mode<synchronous>, transform_indices = @transform_4, window_bounds = array<i64: 1, 128>}, {pipeline_mode = #tpu.pipeline_mode<synchronous>, transform_indices = @transform_5, window_bounds = array<i64: 128, 256>}, {pipeline_mode = #tpu.pipeline_mode<synchronous>, transform_indices = @transform_6, window_bounds = array<i64: 1, 256>}, {pipeline_mode = #tpu.pipeline_mode<synchronous>, transform_indices = @transform_7, window_bounds = array<i64: 256, 896>}, {pipeline_mode = #tpu.pipeline_mode<synchronous>, transform_indices = @transform_8, window_bounds = array<i64: 1, 896>}, {transform_indices = @transform_9, window_bounds = array<i64: 8, 896>}]} {
    %c0 = arith.constant 0 : index
    %c0_0 = arith.constant 0 : index
    %0 = vector.load %arg1[%c0, %c0_0] : memref<8x5xf32, #tpu.memory_space<vmem>>, vector<8x5xf32>
    %c0_1 = arith.constant 0 : index
    %c0_2 = arith.constant 0 : index
    %1 = vector.load %arg3[%c0_1, %c0_2] : memref<5x128xf32, #tpu.memory_space<vmem>>, vector<5x128xf32>
    %cst = arith.constant dense<0.000000e+00> : vector<8x128xf32>
    %2 = tpu.matmul %0, %1, %cst {dimension_numbers = #tpu.dot_dimension_numbers<[1], [0], [0], [1], [0, 0, 1, 1], [], []>} : vector<8x5xf32>, vector<5x128xf32>, vector<8x128xf32> -> vector<8x128xf32>
    %c0_3 = arith.constant 0 : index
    %c0_4 = arith.constant 0 : index
    %3 = vector.load %arg2[%c0_3, %c0_4] : memref<8x10xf32, #tpu.memory_space<vmem>>, vector<8x10xf32>
    %c0_5 = arith.constant 0 : index
    %c0_6 = arith.constant 0 : index
    %4 = vector.load %arg4[%c0_5, %c0_6] : memref<10x128xf32, #tpu.memory_space<vmem>>, vector<10x128xf32>
    %cst_7 = arith.constant dense<0.000000e+00> : vector<8x128xf32>
    %5 = tpu.matmul %3, %4, %cst_7 {dimension_numbers = #tpu.dot_dimension_numbers<[1], [0], [0], [1], [0, 0, 1, 1], [], []>} : vector<8x10xf32>, vector<10x128xf32>, vector<8x128xf32> -> vector<8x128xf32>
    %6 = arith.addf %2, %5 : vector<8x128xf32>
    %c0_8 = arith.constant 0 : index
    %c0_9 = arith.constant 0 : index
    %7 = vector.load %arg5[%c0_8, %c0_9] : memref<1x128xf32, #tpu.memory_space<vmem>>, vector<1x128xf32>
    %8 = vector.broadcast %7 : vector<1x128xf32> to vector<8x128xf32>
    %9 = arith.addf %6, %8 : vector<8x128xf32>
    %cst_10 = arith.constant 0.000000e+00 : f32
    %10 = vector.broadcast %cst_10 : f32 to vector<8x128xf32>
    %11 = arith.maximumf %9, %10 : vector<8x128xf32>
    %c0_11 = arith.constant 0 : index
    %c0_12 = arith.constant 0 : index
    %12 = vector.load %arg6[%c0_11, %c0_12] : memref<128x256xf32, #tpu.memory_space<vmem>>, vector<128x256xf32>
    %cst_13 = arith.constant dense<0.000000e+00> : vector<8x256xf32>
    %13 = tpu.matmul %11, %12, %cst_13 {dimension_numbers = #tpu.dot_dimension_numbers<[1], [0], [0], [1], [0, 0, 1, 1], [], []>} : vector<8x128xf32>, vector<128x256xf32>, vector<8x256xf32> -> vector<8x256xf32>
    %c0_14 = arith.constant 0 : index
    %c0_15 = arith.constant 0 : index
    %14 = vector.load %arg7[%c0_14, %c0_15] : memref<1x256xf32, #tpu.memory_space<vmem>>, vector<1x256xf32>
    %15 = vector.broadcast %14 : vector<1x256xf32> to vector<8x256xf32>
    %16 = arith.addf %13, %15 : vector<8x256xf32>
    %cst_16 = arith.constant 0.000000e+00 : f32
    %17 = vector.broadcast %cst_16 : f32 to vector<8x256xf32>
    %18 = arith.maximumf %16, %17 : vector<8x256xf32>
    %c0_17 = arith.constant 0 : index
    %c0_18 = arith.constant 0 : index
    %19 = vector.load %arg8[%c0_17, %c0_18] : memref<256x896xf32, #tpu.memory_space<vmem>>, vector<256x896xf32>
    %cst_19 = arith.constant dense<0.000000e+00> : vector<8x896xf32>
    %20 = tpu.matmul %18, %19, %cst_19 {dimension_numbers = #tpu.dot_dimension_numbers<[1], [0], [0], [1], [0, 0, 1, 1], [], []>} : vector<8x256xf32>, vector<256x896xf32>, vector<8x896xf32> -> vector<8x896xf32>
    %c0_20 = arith.constant 0 : index
    %c0_21 = arith.constant 0 : index
    %21 = vector.load %arg9[%c0_20, %c0_21] : memref<1x896xf32, #tpu.memory_space<vmem>>, vector<1x896xf32>
    %22 = vector.broadcast %21 : vector<1x896xf32> to vector<8x896xf32>
    %23 = arith.addf %20, %22 : vector<8x896xf32>
    %24 = arith.negf %23 : vector<8x896xf32>
    %25 = math.exp %24 : vector<8x896xf32>
    %cst_22 = arith.constant 1.000000e+00 : f32
    %26 = vector.broadcast %cst_22 : f32 to vector<8x896xf32>
    %27 = arith.addf %26, %25 : vector<8x896xf32>
    %28 = arith.divf %26, %27 : vector<8x896xf32>
    %c0_23 = arith.constant 0 : index
    %c0_24 = arith.constant 0 : index
    %29 = vector.load %arg10[%c0_23, %c0_24] : memref<8x896xf32, #tpu.memory_space<vmem>>, vector<8x896xf32>
    tpu.vector_store %arg10[%c0_23, %c0_24], %28 {strides = array<i32>} : memref<8x896xf32, #tpu.memory_space<vmem>>, vector<8x896xf32>,
    return
  }
  func.func @transform_0(%arg0: i32) -> (i32, i32) {
    %c0_i32 = arith.constant 0 : i32
    %c0_i32_0 = arith.constant 0 : i32
    return %arg0, %c0_i32 : i32, i32
  }
  func.func @transform_1(%arg0: i32) -> (i32, i32) {
    %c0_i32 = arith.constant 0 : i32
    %c0_i32_0 = arith.constant 0 : i32
    return %arg0, %c0_i32 : i32, i32
  }
  func.func @transform_2(%arg0: i32) -> (i32, i32) {
    %c0_i32 = arith.constant 0 : i32
    %c0_i32_0 = arith.constant 0 : i32
    %c0_i32_1 = arith.constant 0 : i32
    return %c0_i32, %c0_i32_0 : i32, i32
  }
  func.func @transform_3(%arg0: i32) -> (i32, i32) {
    %c0_i32 = arith.constant 0 : i32
    %c0_i32_0 = arith.constant 0 : i32
    %c0_i32_1 = arith.constant 0 : i32
    return %c0_i32, %c0_i32_0 : i32, i32
  }
  func.func @transform_4(%arg0: i32) -> (i32, i32) {
    %c0_i32 = arith.constant 0 : i32
    %c0_i32_0 = arith.constant 0 : i32
    %c0_i32_1 = arith.constant 0 : i32
    return %c0_i32, %c0_i32_0 : i32, i32
  }
  func.func @transform_5(%arg0: i32) -> (i32, i32) {
    %c0_i32 = arith.constant 0 : i32
    %c0_i32_0 = arith.constant 0 : i32
    %c0_i32_1 = arith.constant 0 : i32
    return %c0_i32, %c0_i32_0 : i32, i32
  }
  func.func @transform_6(%arg0: i32) -> (i32, i32) {
    %c0_i32 = arith.constant 0 : i32
    %c0_i32_0 = arith.constant 0 : i32
    %c0_i32_1 = arith.constant 0 : i32
    return %c0_i32, %c0_i32_0 : i32, i32
  }
  func.func @transform_7(%arg0: i32) -> (i32, i32) {
    %c0_i32 = arith.constant 0 : i32
    %c0_i32_0 = arith.constant 0 : i32
    %c0_i32_1 = arith.constant 0 : i32
    return %c0_i32, %c0_i32_0 : i32, i32
  }
  func.func @transform_8(%arg0: i32) -> (i32, i32) {
    %c0_i32 = arith.constant 0 : i32
    %c0_i32_0 = arith.constant 0 : i32
    %c0_i32_1 = arith.constant 0 : i32
    return %c0_i32, %c0_i32_0 : i32, i32
  }
  func.func @transform_9(%arg0: i32) -> (i32, i32) {
    %c0_i32 = arith.constant 0 : i32
    %c0_i32_0 = arith.constant 0 : i32
    return %arg0, %c0_i32 : i32, i32
  }
}

</mosaic_0001>

<llo_original>
// kernel: tpu_custom_call.1
$region0: #{tpu_custom_call.1}
  #allocation0 [shape = 'u32[]', space=smem, size = 0x4, offset = 0x4, fixed_abs, tag = 'smem constant byte address 0x4 - core index']
  #allocation1 [shape = 'u32[144,128]{1,0:T(1,128)}', space=vmem, size = 0x12000, scoped, tag = 'internal scratch']
  %s0 = inlined_call_operand.hbm [shape: f32[8,5], index: 0, kind: input, shape index: {}]
  %s1 = inlined_call_operand.hbm [shape: f32[8,10], index: 1, kind: input, shape index: {}]
  %s2 = inlined_call_operand.hbm [shape: f32[5,128], index: 2, kind: input, shape index: {}]
  %s3 = inlined_call_operand.hbm [shape: f32[10,128], index: 3, kind: input, shape index: {}]
  %s4 = inlined_call_operand.vmem [shape: f32[1,128], index: 4, kind: input, shape index: {}]
  %s5 = inlined_call_operand.hbm [shape: f32[128,256], index: 5, kind: input, shape index: {}]
  %s6 = inlined_call_operand.vmem [shape: f32[1,256], index: 6, kind: input, shape index: {}]
  %s7 = inlined_call_operand.hbm [shape: f32[256,896], index: 7, kind: input, shape index: {}]
  %s8 = inlined_call_operand.vmem [shape: f32[1,896], index: 8, kind: input, shape index: {}]
  %s9 = inlined_call_operand.hbm [shape: f32[8,896], index: 9, kind: output, shape index: {}]
  %s10 = sld [smem:[#allocation0]]
  $region70: #{tpu_custom_call.1} parent=0
    _
  %s12 = ssub.s32 1, %s10
  %s13 = scalar_select 0, %s12, %s10
  $region1: #{tpu_custom_call.1} parent=0
    #allocation2 [shape = 'u8[4096]{0}', space=vmem, size = 0x1000, scoped, tag = 'input window, operand 0, single buffered']
    #allocation3 [shape = 's32[1]{0}', space=sflag, size = 0x4, scoped, tag = 'scoped memory for tpu_custom_call.1']
    #allocation4 [shape = 's32[1]{0}', space=sflag, size = 0x4, scoped, tag = 'scoped memory for tpu_custom_call.1']
    #allocation5 [shape = 'u8[4096]{0}', space=vmem, size = 0x1000, scoped, tag = 'input window, operand 1, single buffered']
    #allocation6 [shape = 's32[1]{0}', space=sflag, size = 0x4, scoped, tag = 'scoped memory for tpu_custom_call.1']
    #allocation7 [shape = 'u8[4096]{0}', space=vmem, size = 0x1000, scoped, tag = 'input window, operand 2, single buffered']
    #allocation8 [shape = 'u8[8192]{0}', space=vmem, size = 0x2000, scoped, tag = 'input window, operand 3, single buffered']
    #allocation9 [shape = 's32[1]{0}', space=sflag, size = 0x4, scoped, tag = 'scoped memory for tpu_custom_call.1']
    #allocation10 [shape = 'u8[131072]{0}', space=vmem, size = 0x20000, scoped, tag = 'input window, operand 5, single buffered']
    #allocation11 [shape = 'u8[917504]{0}', space=vmem, size = 0xe0000, scoped, tag = 'input window, operand 7, single buffered']
    #allocation12 [shape = 's32[1]{0}', space=sflag, size = 0x4, scoped, tag = 'scoped memory for tpu_custom_call.1']
    #allocation13 [shape = 'u8[28672]{0}', space=vmem, size = 0x7000, scoped, tag = 'output window, operand 0, single buffered']
    %14 = vsyncpa [#allocation3], 0
    %15 = vsyncpa [#allocation6], 0
    %16 = vsyncpa [#allocation9], 0
    %17 = vsyncpa [#allocation12], 0
    %18 = vsyncpa [#allocation4], 0
    // Predicated region
    $region2: #{tpu_custom_call.1} parent=1 // pred_check
      _
    $region3: #{tpu_custom_call.1} parent=1 // pred_check_branch
      %20 = sbr.rel (0) target = $region5
    $region4: #{tpu_custom_call.1} parent=1 // pred_region
      %s22 = ssub.s32 128, 128
      %23 = vsyncadd [#allocation3], %s22
      %s25 = sshll.u32 [#allocation2], 4
      %s26 = int_to_ptr.vmem [resolvable:$true] %s25
      %28 = dma.hbm_to_vmem [thread:$0]  %s0, 128, %s26, [#allocation3]
    $region5: #{tpu_custom_call.1} parent=1 // pred_fallthru
      _
    // Predicated region
    $region6: #{tpu_custom_call.1} parent=1 // pred_check
      _
    $region7: #{tpu_custom_call.1} parent=1 // pred_check_branch
      %30 = sbr.rel (0) target = $region9
    $region8: #{tpu_custom_call.1} parent=1 // pred_region
      %s32 = ssub.s32 128, 128
      %33 = vsyncadd [#allocation6], %s32
      %s35 = sshll.u32 [#allocation5], 4
      %s36 = int_to_ptr.vmem [resolvable:$true] %s35
      %38 = dma.hbm_to_vmem [thread:$0]  %s1, 128, %s36, [#allocation6]
    $region9: #{tpu_custom_call.1} parent=1 // pred_fallthru
      _
    // Predicated region
    $region10: #{tpu_custom_call.1} parent=1 // pred_check
      _
    $region11: #{tpu_custom_call.1} parent=1 // pred_check_branch
      %40 = sbr.rel (0) target = $region13
    $region12: #{tpu_custom_call.1} parent=1 // pred_region
      %s42 = ssub.s32 128, 128
      %43 = vsyncadd [#allocation6], %s42
      %s45 = sshll.u32 [#allocation7], 4
      %s46 = int_to_ptr.vmem [resolvable:$true] %s45
      %48 = dma.hbm_to_vmem [thread:$0]  %s2, 128, %s46, [#allocation6]
    $region13: #{tpu_custom_call.1} parent=1 // pred_fallthru
      _
    // Predicated region
    $region14: #{tpu_custom_call.1} parent=1 // pred_check
      _
    $region15: #{tpu_custom_call.1} parent=1 // pred_check_branch
      %50 = sbr.rel (0) target = $region17
    $region16: #{tpu_custom_call.1} parent=1 // pred_region
      %s52 = ssub.s32 256, 256
      %53 = vsyncadd [#allocation9], %s52
      %s54 = sshll.u32 [#allocation8], 4
      %s55 = int_to_ptr.vmem [resolvable:$true] %s54
      %60 = dma.hbm_to_vmem [thread:$0]  %s3, 256, %s55, [#allocation9], 128, 128, 8
    $region17: #{tpu_custom_call.1} parent=1 // pred_fallthru
      _
    // Predicated region
    $region18: #{tpu_custom_call.1} parent=1 // pred_check
      _
    $region19: #{tpu_custom_call.1} parent=1 // pred_check_branch
      %62 = sbr.rel (0) target = $region21
    $region20: #{tpu_custom_call.1} parent=1 // pred_region
      _
    $region21: #{tpu_custom_call.1} parent=1 // pred_fallthru
      _
    // Predicated region
    $region22: #{tpu_custom_call.1} parent=1 // pred_check
      _
    $region23: #{tpu_custom_call.1} parent=1 // pred_check_branch
      %64 = sbr.rel (0) target = $region25
    $region24: #{tpu_custom_call.1} parent=1 // pred_region
      %s66 = ssub.s32 4096, 4096
      %67 = vsyncadd [#allocation9], %s66
      %s68 = sshll.u32 [#allocation10], 4
      %s69 = int_to_ptr.vmem [resolvable:$true] %s68
      %74 = dma.hbm_to_vmem [thread:$0]  %s5, 4096, %s69, [#allocation9], 256, 256, 16
    $region25: #{tpu_custom_call.1} parent=1 // pred_fallthru
      _
    // Predicated region
    $region26: #{tpu_custom_call.1} parent=1 // pred_check
      _
    $region27: #{tpu_custom_call.1} parent=1 // pred_check_branch
      %76 = sbr.rel (0) target = $region29
    $region28: #{tpu_custom_call.1} parent=1 // pred_region
      _
    $region29: #{tpu_custom_call.1} parent=1 // pred_fallthru
      _
    // Predicated region
    $region30: #{tpu_custom_call.1} parent=1 // pred_check
      _
    $region31: #{tpu_custom_call.1} parent=1 // pred_check_branch
      %78 = sbr.rel (0) target = $region33
    $region32: #{tpu_custom_call.1} parent=1 // pred_region
      %s80 = ssub.s32 28672, 28672
      %81 = vsyncadd [#allocation12], %s80
      %s82 = sshll.u32 [#allocation11], 4
      %s83 = int_to_ptr.vmem [resolvable:$true] %s82
      %88 = dma.hbm_to_vmem [thread:$0]  %s7, 28672, %s83, [#allocation12], 896, 896, 56
    $region33: #{tpu_custom_call.1} parent=1 // pred_fallthru
      _
    // Predicated region
    $region34: #{tpu_custom_call.1} parent=1 // pred_check
      _
    $region35: #{tpu_custom_call.1} parent=1 // pred_check_branch
      %90 = sbr.rel (0) target = $region37
    $region36: #{tpu_custom_call.1} parent=1 // pred_region
      _
    $region37: #{tpu_custom_call.1} parent=1 // pred_fallthru
      _
    // Predicated region
    $region38: #{tpu_custom_call.1} parent=1 // pred_check
      _
    $region39: #{tpu_custom_call.1} parent=1 // pred_check_branch
      %92 = sbr.rel (0) target = $region41
    $region40: #{tpu_custom_call.1} parent=1 // pred_region
      %93 = dma.done [#allocation3], 128
    $region41: #{tpu_custom_call.1} parent=1 // pred_fallthru
      _
    // Predicated region
    $region42: #{tpu_custom_call.1} parent=1 // pred_check
      _
    $region43: #{tpu_custom_call.1} parent=1 // pred_check_branch
      %95 = sbr.rel (0) target = $region45
    $region44: #{tpu_custom_call.1} parent=1 // pred_region
      %96 = dma.done [#allocation6], 128
    $region45: #{tpu_custom_call.1} parent=1 // pred_fallthru
      _
    // Predicated region
    $region46: #{tpu_custom_call.1} parent=1 // pred_check
      _
    $region47: #{tpu_custom_call.1} parent=1 // pred_check_branch
      %98 = sbr.rel (0) target = $region49
    $region48: #{tpu_custom_call.1} parent=1 // pred_region
      %99 = dma.done [#allocation6], 128
    $region49: #{tpu_custom_call.1} parent=1 // pred_fallthru
      _
    // Predicated region
    $region50: #{tpu_custom_call.1} parent=1 // pred_check
      _
    $region51: #{tpu_custom_call.1} parent=1 // pred_check_branch
      %101 = sbr.rel (0) target = $region53
    $region52: #{tpu_custom_call.1} parent=1 // pred_region
      %102 = dma.done [#allocation9], 256
    $region53: #{tpu_custom_call.1} parent=1 // pred_fallthru
      _
    // Predicated region
    $region54: #{tpu_custom_call.1} parent=1 // pred_check
      _
    $region55: #{tpu_custom_call.1} parent=1 // pred_check_branch
      %104 = sbr.rel (0) target = $region57
    $region56: #{tpu_custom_call.1} parent=1 // pred_region
      %105 = dma.done [#allocation9], 4096
    $region57: #{tpu_custom_call.1} parent=1 // pred_fallthru
      _
    // Predicated region
    $region58: #{tpu_custom_call.1} parent=1 // pred_check
      _
    $region59: #{tpu_custom_call.1} parent=1 // pred_check_branch
      %107 = sbr.rel (0) target = $region61
    $region60: #{tpu_custom_call.1} parent=1 // pred_region
      %108 = dma.done [#allocation12], 28672
    $region61: #{tpu_custom_call.1} parent=1 // pred_fallthru
      _
    %v109 = vld [vmem:[#allocation2] sm:$0xff]
    %v110 = vld [vmem:[#allocation7] sm:$0x1f]
    %v111 = vld [vmem:[#allocation5] sm:$0xff]
    %v112 = vld [vmem:[#allocation8] sm:$0xff]
    %v113 = vld [vmem:[#allocation8 + $0x8] sm:$0x3]
    %vm114 = vcmask 80896
    %v116 = vsel %vm114, %v111, 0
    %vm118 = vcmask 1041408
    %v120 = vsel %vm118, %v113, 0
    %122 = vmatprep.subr.mxu0 0.0
    %123 = vmatpush1.msra.mxu0 %v112
    %124 = vmatprep.subr.mxu0 0.0
    %125 = vmatpush1.msra.mxu0 %v120
    %126 = vmatprep.subr.mxu0 0.0
    %127 = vmatpush1.msra.mxu0 0.0
    %128 = vmatprep.subr.mxu0 0.0
    %129 = vmatpush1.msra.mxu0 0.0
    %130 = vmatprep.subr.mxu0 0.0
    %131 = vmatpush1.msra.mxu0 0.0
    %132 = vmatprep.subr.mxu0 0.0
    %133 = vmatpush1.msra.mxu0 0.0
    %134 = vmatprep.subr.mxu0 0.0
    %135 = vmatpush1.msra.mxu0 0.0
    %136 = vmatprep.subr.mxu0 0.0
    %137 = vmatpush1.msra.mxu0 0.0
    %138 = vmatprep.subr.mxu0 0.0
    %139 = vmatpush1.msra.mxu0 0.0
    %140 = vmatprep.subr.mxu0 0.0
    %141 = vmatpush1.msra.mxu0 0.0
    %142 = vmatprep.subr.mxu0 0.0
    %143 = vmatpush1.msra.mxu0 0.0
    %144 = vmatprep.subr.mxu0 0.0
    %145 = vmatpush1.msra.mxu0 0.0
    %146 = vmatprep.subr.mxu0 0.0
    %147 = vmatpush1.msra.mxu0 0.0
    %148 = vmatprep.subr.mxu0 0.0
    %149 = vmatpush1.msra.mxu0 0.0
    %150 = vmatprep.subr.mxu0 0.0
    %151 = vmatpush1.msra.mxu0 0.0
    %152 = vmatprep.subr.mxu0 0.0
    %153 = vmatpush1.msra.mxu0 0.0
    %154 = vmatprep.subr.mxu0 0.0
    %155 = vmatpush1.msra.mxu0 0.0
    %156 = vmatprep.subr.mxu0 0.0
    %157 = vmatpush1.msra.mxu0 0.0
    %158 = vmatprep.subr.mxu0 0.0
    %159 = vmatpush1.msra.mxu0 0.0
    %160 = vmatprep.subr.mxu0 0.0
    %161 = vmatpush1.msra.mxu0 0.0
    %162 = vmatprep.subr.mxu0 0.0
    %163 = vmatpush1.msra.mxu0 0.0
    %164 = vmatprep.subr.mxu0 0.0
    %165 = vmatpush1.msra.mxu0 0.0
    %166 = vmatprep.subr.mxu0 0.0
    %167 = vmatpush1.msra.mxu0 0.0
    %168 = vmatprep.subr.mxu0 0.0
    %169 = vmatpush1.msra.mxu0 0.0
    %170 = vmatprep.subr.mxu0 0.0
    %171 = vmatpush1.msra.mxu0 0.0
    %172 = vmatprep.subr.mxu0 0.0
    %173 = vmatpush1.msra.mxu0 0.0
    %174 = vmatprep.subr.mxu0 0.0
    %175 = vmatpush1.msra.mxu0 0.0
    %176 = vmatprep.subr.mxu0 0.0
    %177 = vmatpush1.msra.mxu0 0.0
    %178 = vmatprep.subr.mxu0 0.0
    %179 = vmatpush1.msra.mxu0 0.0
    %180 = vmatprep.subr.mxu0 0.0
    %181 = vmatpush1.msra.mxu0 0.0
    %182 = vmatprep.subr.mxu0 0.0
    %183 = vmatpush1.msra.mxu0 0.0
    %184 = vmatprep.subr.mxu0 0.0
    %185 = vmatpush1.msra.mxu0 0.0
    %186 = vmatprep.mubr.f32.mxu0 0.0
    %187 = vmatmul.mubr.f32.gmra.mrb[0].mxu0 %v116
    %v188 = vpop.f32.mrb[0].mxu0
    %v189 = vadd.f32 0.0, %v188
    %v190 = vpop.f32.mrb[0].mxu0
    %191 = vdwg.mxu0
    %vm192 = vcmask 39936
    %v194 = vsel %vm192, %v109, 0
    %vm196 = vcmask 1044480
    %v198 = vsel %vm196, %v110, 0
    %200 = vmatprep.subr.mxu0 0.0
    %201 = vmatpush1.msra.mxu0 %v198
    %202 = vmatprep.subr.mxu0 0.0
    %203 = vmatpush1.msra.mxu0 0.0
    %204 = vmatprep.subr.mxu0 0.0
    %205 = vmatpush1.msra.mxu0 0.0
    %206 = vmatprep.subr.mxu0 0.0
    %207 = vmatpush1.msra.mxu0 0.0
    %208 = vmatprep.subr.mxu0 0.0
    %209 = vmatpush1.msra.mxu0 0.0
    %210 = vmatprep.subr.mxu0 0.0
    %211 = vmatpush1.msra.mxu0 0.0
    %212 = vmatprep.subr.mxu0 0.0
    %213 = vmatpush1.msra.mxu0 0.0
    %214 = vmatprep.subr.mxu0 0.0
    %215 = vmatpush1.msra.mxu0 0.0
    %216 = vmatprep.subr.mxu0 0.0
    %217 = vmatpush1.msra.mxu0 0.0
    %218 = vmatprep.subr.mxu0 0.0
    %219 = vmatpush1.msra.mxu0 0.0
    %220 = vmatprep.subr.mxu0 0.0
    %221 = vmatpush1.msra.mxu0 0.0
    %222 = vmatprep.subr.mxu0 0.0
    %223 = vmatpush1.msra.mxu0 0.0
    %224 = vmatprep.subr.mxu0 0.0
    %225 = vmatpush1.msra.mxu0 0.0
    %226 = vmatprep.subr.mxu0 0.0
    %227 = vmatpush1.msra.mxu0 0.0
    %228 = vmatprep.subr.mxu0 0.0
    %229 = vmatpush1.msra.mxu0 0.0
    %230 = vmatprep.subr.mxu0 0.0
    %231 = vmatpush1.msra.mxu0 0.0
    %232 = vmatprep.subr.mxu0 0.0
    %233 = vmatpush1.msra.mxu0 0.0
    %234 = vmatprep.subr.mxu0 0.0
    %235 = vmatpush1.msra.mxu0 0.0
    %236 = vmatprep.subr.mxu0 0.0
    %237 = vmatpush1.msra.mxu0 0.0
    %238 = vmatprep.subr.mxu0 0.0
    %239 = vmatpush1.msra.mxu0 0.0
    %240 = vmatprep.subr.mxu0 0.0
    %241 = vmatpush1.msra.mxu0 0.0
    %242 = vmatprep.subr.mxu0 0.0
    %243 = vmatpush1.msra.mxu0 0.0
    %244 = vmatprep.subr.mxu0 0.0
    %245 = vmatpush1.msra.mxu0 0.0
    %246 = vmatprep.subr.mxu0 0.0
    %247 = vmatpush1.msra.mxu0 0.0
    %248 = vmatprep.subr.mxu0 0.0
    %249 = vmatpush1.msra.mxu0 0.0
    %250 = vmatprep.subr.mxu0 0.0
    %251 = vmatpush1.msra.mxu0 0.0
    %252 = vmatprep.subr.mxu0 0.0
    %253 = vmatpush1.msra.mxu0 0.0
    %254 = vmatprep.subr.mxu0 0.0
    %255 = vmatpush1.msra.mxu0 0.0
    %256 = vmatprep.subr.mxu0 0.0
    %257 = vmatpush1.msra.mxu0 0.0
    %258 = vmatprep.subr.mxu0 0.0
    %259 = vmatpush1.msra.mxu0 0.0
    %260 = vmatprep.subr.mxu0 0.0
    %261 = vmatpush1.msra.mxu0 0.0
    %262 = vmatprep.subr.mxu0 0.0
    %263 = vmatpush1.msra.mxu0 0.0
    %264 = vmatprep.mubr.f32.mxu0 0.0
    %265 = vmatmul.mubr.f32.gmra.mrb[0].mxu0 %v194
    %v266 = vpop.f32.mrb[0].mxu0
    %v267 = vadd.f32 %v189, %v266
    %v268 = vpop.f32.mrb[0].mxu0
    %269 = vdwg.mxu0
    %v270 = vld [vmem:[%s4] sm:$0x1]
    %v272 = vlaneseq
    %v273 = vshrl.u32 %v272, 7
    %v274 = vsub.s32 0, %v273
    %v275 = vrot.slane %v270, %v274
    %v277 = vadd.f32 %v267, %v275
    %v278 = vmax.f32 %v277, 0.0
    %v279 = vld [vmem:[#allocation10] sm:$0xff]
    %v280 = vld [vmem:[#allocation10 + $0x8] sm:$0xff]
    %v281 = vld [vmem:[#allocation10 + $0x10] sm:$0xff]
    %v282 = vld [vmem:[#allocation10 + $0x18] sm:$0xff]
    %v283 = vld [vmem:[#allocation10 + $0x20] sm:$0xff]
    %v284 = vld [vmem:[#allocation10 + $0x28] sm:$0xff]
    %v285 = vld [vmem:[#allocation10 + $0x30] sm:$0xff]
    %v286 = vld [vmem:[#allocation10 + $0x38] sm:$0xff]
    %v287 = vld [vmem:[#allocation10 + $0x40] sm:$0xff]
    %v288 = vld [vmem:[#allocation10 + $0x48] sm:$0xff]
    %v289 = vld [vmem:[#allocation10 + $0x50] sm:$0xff]
    %v290 = vld [vmem:[#allocation10 + $0x58] sm:$0xff]
    %v291 = vld [vmem:[#allocation10 + $0x60] sm:$0xff]
    %v292 = vld [vmem:[#allocation10 + $0x68] sm:$0xff]
    %v293 = vld [vmem:[#allocation10 + $0x70] sm:$0xff]
    %v294 = vld [vmem:[#allocation10 + $0x78] sm:$0xff]
    %v295 = vld [vmem:[#allocation10 + $0x80] sm:$0xff]
    %v296 = vld [vmem:[#allocation10 + $0x88] sm:$0xff]
    %v297 = vld [vmem:[#allocation10 + $0x90] sm:$0xff]
    %v298 = vld [vmem:[#allocation10 + $0x98] sm:$0xff]
    %v299 = vld [vmem:[#allocation10 + $0xa0] sm:$0xff]
    %v300 = vld [vmem:[#allocation10 + $0xa8] sm:$0xff]
    %v301 = vld [vmem:[#allocation10 + $0xb0] sm:$0xff]
    %v302 = vld [vmem:[#allocation10 + $0xb8] sm:$0xff]
    %v303 = vld [vmem:[#allocation10 + $0xc0] sm:$0xff]
    %v304 = vld [vmem:[#allocation10 + $0xc8] sm:$0xff]
    %v305 = vld [vmem:[#allocation10 + $0xd0] sm:$0xff]
    %v306 = vld [vmem:[#allocation10 + $0xd8] sm:$0xff]
    %v307 = vld [vmem:[#allocation10 + $0xe0] sm:$0xff]
    %v308 = vld [vmem:[#allocation10 + $0xe8] sm:$0xff]
    %v309 = vld [vmem:[#allocation10 + $0xf0] sm:$0xff]
    %v310 = vld [vmem:[#allocation10 + $0xf8] sm:$0xff]
    %v311 = vld [vmem:[%s6] sm:$0x3]
    %v313 = vlaneseq
    %v314 = vshrl.u32 %v313, 7
    %v315 = vsub.s32 0, %v314
    %v316 = vrot.slane %v311, %v315
    %v317 = vlaneseq
    %v318 = vshrl.u32 %v317, 7
    %v319 = vsub.s32 1, %v318
    %v320 = vrot.slane %v311, %v319
    %323 = vmatprep.subr.mxu0 %v280
    %324 = vmatpush1.msra.mxu0 %v279
    %325 = vmatprep.subr.mxu0 %v282
    %326 = vmatpush1.msra.mxu0 %v281
    %327 = vmatprep.subr.mxu0 %v284
    %328 = vmatpush1.msra.mxu0 %v283
    %329 = vmatprep.subr.mxu0 %v286
    %330 = vmatpush1.msra.mxu0 %v285
    %331 = vmatprep.subr.mxu0 %v288
    %332 = vmatpush1.msra.mxu0 %v287
    %333 = vmatprep.subr.mxu0 %v290
    %334 = vmatpush1.msra.mxu0 %v289
    %335 = vmatprep.subr.mxu0 %v292
    %336 = vmatpush1.msra.mxu0 %v291
    %337 = vmatprep.subr.mxu0 %v294
    %338 = vmatpush1.msra.mxu0 %v293
    %339 = vmatprep.subr.mxu0 %v296
    %340 = vmatpush1.msra.mxu0 %v295
    %341 = vmatprep.subr.mxu0 %v298
    %342 = vmatpush1.msra.mxu0 %v297
    %343 = vmatprep.subr.mxu0 %v300
    %344 = vmatpush1.msra.mxu0 %v299
    %345 = vmatprep.subr.mxu0 %v302
    %346 = vmatpush1.msra.mxu0 %v301
    %347 = vmatprep.subr.mxu0 %v304
    %348 = vmatpush1.msra.mxu0 %v303
    %349 = vmatprep.subr.mxu0 %v306
    %350 = vmatpush1.msra.mxu0 %v305
    %351 = vmatprep.subr.mxu0 %v308
    %352 = vmatpush1.msra.mxu0 %v307
    %353 = vmatprep.subr.mxu0 %v310
    %354 = vmatpush1.msra.mxu0 %v309
    %355 = vmatprep.subr.mxu0 0.0
    %356 = vmatpush1.msra.mxu0 0.0
    %357 = vmatprep.subr.mxu0 0.0
    %358 = vmatpush1.msra.mxu0 0.0
    %359 = vmatprep.subr.mxu0 0.0
    %360 = vmatpush1.msra.mxu0 0.0
    %361 = vmatprep.subr.mxu0 0.0
    %362 = vmatpush1.msra.mxu0 0.0
    %363 = vmatprep.subr.mxu0 0.0
    %364 = vmatpush1.msra.mxu0 0.0
    %365 = vmatprep.subr.mxu0 0.0
    %366 = vmatpush1.msra.mxu0 0.0
    %367 = vmatprep.subr.mxu0 0.0
    %368 = vmatpush1.msra.mxu0 0.0
    %369 = vmatprep.subr.mxu0 0.0
    %370 = vmatpush1.msra.mxu0 0.0
    %371 = vmatprep.subr.mxu0 0.0
    %372 = vmatpush1.msra.mxu0 0.0
    %373 = vmatprep.subr.mxu0 0.0
    %374 = vmatpush1.msra.mxu0 0.0
    %375 = vmatprep.subr.mxu0 0.0
    %376 = vmatpush1.msra.mxu0 0.0
    %377 = vmatprep.subr.mxu0 0.0
    %378 = vmatpush1.msra.mxu0 0.0
    %379 = vmatprep.subr.mxu0 0.0
    %380 = vmatpush1.msra.mxu0 0.0
    %381 = vmatprep.subr.mxu0 0.0
    %382 = vmatpush1.msra.mxu0 0.0
    %383 = vmatprep.subr.mxu0 0.0
    %384 = vmatpush1.msra.mxu0 0.0
    %385 = vmatprep.subr.mxu0 0.0
    %386 = vmatpush1.msra.mxu0 0.0
    %387 = vmatprep.mubr.f32.mxu0 0.0
    %388 = vmatmul.mubr.f32.gmra.mrb[0].mxu0 %v278
    %v389 = vpop.f32.mrb[0].mxu0
    %v390 = vadd.f32 %v316, %v389
    %v391 = vpop.f32.mrb[0].mxu0
    %v392 = vadd.f32 %v320, %v391
    %393 = vdwg.mxu0
    %v394 = vmax.f32 %v390, 0.0
    %v395 = vmax.f32 %v392, 0.0
    %v396 = vld [vmem:[#allocation11] sm:$0xff]
    %v397 = vld [vmem:[#allocation11 + $0x8] sm:$0xff]
    %v398 = vld [vmem:[#allocation11 + $0x10] sm:$0xff]
    %v399 = vld [vmem:[#allocation11 + $0x18] sm:$0xff]
    %v400 = vld [vmem:[#allocation11 + $0x20] sm:$0xff]
    %v401 = vld [vmem:[#allocation11 + $0x28] sm:$0xff]
    %v402 = vld [vmem:[#allocation11 + $0x30] sm:$0xff]
    %v403 = vld [vmem:[#allocation11 + $0x38] sm:$0xff]
    %v404 = vld [vmem:[#allocation11 + $0x40] sm:$0xff]
    %v405 = vld [vmem:[#allocation11 + $0x48] sm:$0xff]
    %v406 = vld [vmem:[#allocation11 + $0x50] sm:$0xff]
    %v407 = vld [vmem:[#allocation11 + $0x58] sm:$0xff]
    %v408 = vld [vmem:[#allocation11 + $0x60] sm:$0xff]
    %v409 = vld [vmem:[#allocation11 + $0x68] sm:$0xff]
    %v410 = vld [vmem:[#allocation11 + $0x70] sm:$0xff]
    %v411 = vld [vmem:[#allocation11 + $0x78] sm:$0xff]
    %v412 = vld [vmem:[#allocation11 + $0x80] sm:$0xff]
    %v413 = vld [vmem:[#allocation11 + $0x88] sm:$0xff]
    %v414 = vld [vmem:[#allocation11 + $0x90] sm:$0xff]
    %v415 = vld [vmem:[#allocation11 + $0x98] sm:$0xff]
    %v416 = vld [vmem:[#allocation11 + $0xa0] sm:$0xff]
    %v417 = vld [vmem:[#allocation11 + $0xa8] sm:$0xff]
    %v418 = vld [vmem:[#allocation11 + $0xb0] sm:$0xff]
    %v419 = vld [vmem:[#allocation11 + $0xb8] sm:$0xff]
    %v420 = vld [vmem:[#allocation11 + $0xc0] sm:$0xff]
    %v421 = vld [vmem:[#allocation11 + $0xc8] sm:$0xff]
    %v422 = vld [vmem:[#allocation11 + $0xd0] sm:$0xff]
    %v423 = vld [vmem:[#allocation11 + $0xd8] sm:$0xff]
    %v424 = vld [vmem:[#allocation11 + $0xe0] sm:$0xff]
    %v425 = vld [vmem:[#allocation11 + $0xe8] sm:$0xff]
    %v426 = vld [vmem:[#allocation11 + $0xf0] sm:$0xff]
    %v427 = vld [vmem:[#allocation11 + $0xf8] sm:$0xff]
    %v428 = vld [vmem:[#allocation11 + $0x100] sm:$0xff]
    %v429 = vld [vmem:[#allocation11 + $0x108] sm:$0xff]
    %v430 = vld [vmem:[#allocation11 + $0x110] sm:$0xff]
    %v431 = vld [vmem:[#allocation11 + $0x118] sm:$0xff]
    %v432 = vld [vmem:[#allocation11 + $0x120] sm:$0xff]
    %v433 = vld [vmem:[#allocation11 + $0x128] sm:$0xff]
    %v434 = vld [vmem:[#allocation11 + $0x130] sm:$0xff]
    %v435 = vld [vmem:[#allocation11 + $0x138] sm:$0xff]
    %v436 = vld [vmem:[#allocation11 + $0x140] sm:$0xff]
    %v437 = vld [vmem:[#allocation11 + $0x148] sm:$0xff]
    %v438 = vld [vmem:[#allocation11 + $0x150] sm:$0xff]
    %v439 = vld [vmem:[#allocation11 + $0x158] sm:$0xff]
    %v440 = vld [vmem:[#allocation11 + $0x160] sm:$0xff]
    %v441 = vld [vmem:[#allocation11 + $0x168] sm:$0xff]
    %v442 = vld [vmem:[#allocation11 + $0x170] sm:$0xff]
    %v443 = vld [vmem:[#allocation11 + $0x178] sm:$0xff]
    %v444 = vld [vmem:[#allocation11 + $0x180] sm:$0xff]
    %v445 = vld [vmem:[#allocation11 + $0x188] sm:$0xff]
    %v446 = vld [vmem:[#allocation11 + $0x190] sm:$0xff]
    %v447 = vld [vmem:[#allocation11 + $0x198] sm:$0xff]
    %v448 = vld [vmem:[#allocation11 + $0x1a0] sm:$0xff]
    %v449 = vld [vmem:[#allocation11 + $0x1a8] sm:$0xff]
    %v450 = vld [vmem:[#allocation11 + $0x1b0] sm:$0xff]
    %v451 = vld [vmem:[#allocation11 + $0x1b8] sm:$0xff]
    %v452 = vld [vmem:[#allocation11 + $0x1c0] sm:$0xff]
    %v453 = vld [vmem:[#allocation11 + $0x1c8] sm:$0xff]
    %v454 = vld [vmem:[#allocation11 + $0x1d0] sm:$0xff]
    %v455 = vld [vmem:[#allocation11 + $0x1d8] sm:$0xff]
    %v456 = vld [vmem:[#allocation11 + $0x1e0] sm:$0xff]
    %v457 = vld [vmem:[#allocation11 + $0x1e8] sm:$0xff]
    %v458 = vld [vmem:[#allocation11 + $0x1f0] sm:$0xff]
    %v459 = vld [vmem:[#allocation11 + $0x1f8] sm:$0xff]
    %v460 = vld [vmem:[#allocation11 + $0x200] sm:$0xff]
    %v461 = vld [vmem:[#allocation11 + $0x208] sm:$0xff]
    %v462 = vld [vmem:[#allocation11 + $0x210] sm:$0xff]
    %v463 = vld [vmem:[#allocation11 + $0x218] sm:$0xff]
    %v464 = vld [vmem:[#allocation11 + $0x220] sm:$0xff]
    %v465 = vld [vmem:[#allocation11 + $0x228] sm:$0xff]
    %v466 = vld [vmem:[#allocation11 + $0x230] sm:$0xff]
    %v467 = vld [vmem:[#allocation11 + $0x238] sm:$0xff]
    %v468 = vld [vmem:[#allocation11 + $0x240] sm:$0xff]
    %v469 = vld [vmem:[#allocation11 + $0x248] sm:$0xff]
    %v470 = vld [vmem:[#allocation11 + $0x250] sm:$0xff]
    %v471 = vld [vmem:[#allocation11 + $0x258] sm:$0xff]
    %v472 = vld [vmem:[#allocation11 + $0x260] sm:$0xff]
    %v473 = vld [vmem:[#allocation11 + $0x268] sm:$0xff]
    %v474 = vld [vmem:[#allocation11 + $0x270] sm:$0xff]
    %v475 = vld [vmem:[#allocation11 + $0x278] sm:$0xff]
    %v476 = vld [vmem:[#allocation11 + $0x280] sm:$0xff]
    %v477 = vld [vmem:[#allocation11 + $0x288] sm:$0xff]
    %v478 = vld [vmem:[#allocation11 + $0x290] sm:$0xff]
    %v479 = vld [vmem:[#allocation11 + $0x298] sm:$0xff]
    %v480 = vld [vmem:[#allocation11 + $0x2a0] sm:$0xff]
    %v481 = vld [vmem:[#allocation11 + $0x2a8] sm:$0xff]
    %v482 = vld [vmem:[#allocation11 + $0x2b0] sm:$0xff]
    %v483 = vld [vmem:[#allocation11 + $0x2b8] sm:$0xff]
    %v484 = vld [vmem:[#allocation11 + $0x2c0] sm:$0xff]
    %v485 = vld [vmem:[#allocation11 + $0x2c8] sm:$0xff]
    %v486 = vld [vmem:[#allocation11 + $0x2d0] sm:$0xff]
    %v487 = vld [vmem:[#allocation11 + $0x2d8] sm:$0xff]
    %v488 = vld [vmem:[#allocation11 + $0x2e0] sm:$0xff]
    %v489 = vld [vmem:[#allocation11 + $0x2e8] sm:$0xff]
    %v490 = vld [vmem:[#allocation11 + $0x2f0] sm:$0xff]
    %v491 = vld [vmem:[#allocation11 + $0x2f8] sm:$0xff]
    %v492 = vld [vmem:[#allocation11 + $0x300] sm:$0xff]
    %v493 = vld [vmem:[#allocation11 + $0x308] sm:$0xff]
    %v494 = vld [vmem:[#allocation11 + $0x310] sm:$0xff]
    %v495 = vld [vmem:[#allocation11 + $0x318] sm:$0xff]
    %v496 = vld [vmem:[#allocation11 + $0x320] sm:$0xff]
    %v497 = vld [vmem:[#allocation11 + $0x328] sm:$0xff]
    %v498 = vld [vmem:[#allocation11 + $0x330] sm:$0xff]
    %v499 = vld [vmem:[#allocation11 + $0x338] sm:$0xff]
    %v500 = vld [vmem:[#allocation11 + $0x340] sm:$0xff]
    %v501 = vld [vmem:[#allocation11 + $0x348] sm:$0xff]
    %v502 = vld [vmem:[#allocation11 + $0x350] sm:$0xff]
    %v503 = vld [vmem:[#allocation11 + $0x358] sm:$0xff]
    %v504 = vld [vmem:[#allocation11 + $0x360] sm:$0xff]
    %v505 = vld [vmem:[#allocation11 + $0x368] sm:$0xff]
    %v506 = vld [vmem:[#allocation11 + $0x370] sm:$0xff]
    %v507 = vld [vmem:[#allocation11 + $0x378] sm:$0xff]
    %v508 = vld [vmem:[#allocation11 + $0x380] sm:$0xff]
    %v509 = vld [vmem:[#allocation11 + $0x388] sm:$0xff]
    %v510 = vld [vmem:[#allocation11 + $0x390] sm:$0xff]
    %v511 = vld [vmem:[#allocation11 + $0x398] sm:$0xff]
    %v512 = vld [vmem:[#allocation11 + $0x3a0] sm:$0xff]
    %v513 = vld [vmem:[#allocation11 + $0x3a8] sm:$0xff]
    %v514 = vld [vmem:[#allocation11 + $0x3b0] sm:$0xff]
    %v515 = vld [vmem:[#allocation11 + $0x3b8] sm:$0xff]
    %v516 = vld [vmem:[#allocation11 + $0x3c0] sm:$0xff]
    %v517 = vld [vmem:[#allocation11 + $0x3c8] sm:$0xff]
    %v518 = vld [vmem:[#allocation11 + $0x3d0] sm:$0xff]
    %v519 = vld [vmem:[#allocation11 + $0x3d8] sm:$0xff]
    %v520 = vld [vmem:[#allocation11 + $0x3e0] sm:$0xff]
    %v521 = vld [vmem:[#allocation11 + $0x3e8] sm:$0xff]
    %v522 = vld [vmem:[#allocation11 + $0x3f0] sm:$0xff]
    %v523 = vld [vmem:[#allocation11 + $0x3f8] sm:$0xff]
    %v524 = vld [vmem:[#allocation11 + $0x400] sm:$0xff]
    %v525 = vld [vmem:[#allocation11 + $0x408] sm:$0xff]
    %v526 = vld [vmem:[#allocation11 + $0x410] sm:$0xff]
    %v527 = vld [vmem:[#allocation11 + $0x418] sm:$0xff]
    %v528 = vld [vmem:[#allocation11 + $0x420] sm:$0xff]
    %v529 = vld [vmem:[#allocation11 + $0x428] sm:$0xff]
    %v530 = vld [vmem:[#allocation11 + $0x430] sm:$0xff]
    %v531 = vld [vmem:[#allocation11 + $0x438] sm:$0xff]
    %v532 = vld [vmem:[#allocation11 + $0x440] sm:$0xff]
    %v533 = vld [vmem:[#allocation11 + $0x448] sm:$0xff]
    %v534 = vld [vmem:[#allocation11 + $0x450] sm:$0xff]
    %v535 = vld [vmem:[#allocation11 + $0x458] sm:$0xff]
    %v536 = vld [vmem:[#allocation11 + $0x460] sm:$0xff]
    %v537 = vld [vmem:[#allocation11 + $0x468] sm:$0xff]
    %v538 = vld [vmem:[#allocation11 + $0x470] sm:$0xff]
    %v539 = vld [vmem:[#allocation11 + $0x478] sm:$0xff]
    %v540 = vld [vmem:[#allocation11 + $0x480] sm:$0xff]
    %v541 = vld [vmem:[#allocation11 + $0x488] sm:$0xff]
    %v542 = vld [vmem:[#allocation11 + $0x490] sm:$0xff]
    %v543 = vld [vmem:[#allocation11 + $0x498] sm:$0xff]
    %v544 = vld [vmem:[#allocation11 + $0x4a0] sm:$0xff]
    %v545 = vld [vmem:[#allocation11 + $0x4a8] sm:$0xff]
    %v546 = vld [vmem:[#allocation11 + $0x4b0] sm:$0xff]
    %v547 = vld [vmem:[#allocation11 + $0x4b8] sm:$0xff]
    %v548 = vld [vmem:[#allocation11 + $0x4c0] sm:$0xff]
    %v549 = vld [vmem:[#allocation11 + $0x4c8] sm:$0xff]
    %v550 = vld [vmem:[#allocation11 + $0x4d0] sm:$0xff]
    %v551 = vld [vmem:[#allocation11 + $0x4d8] sm:$0xff]
    %v552 = vld [vmem:[#allocation11 + $0x4e0] sm:$0xff]
    %v553 = vld [vmem:[#allocation11 + $0x4e8] sm:$0xff]
    %v554 = vld [vmem:[#allocation11 + $0x4f0] sm:$0xff]
    %v555 = vld [vmem:[#allocation11 + $0x4f8] sm:$0xff]
    %v556 = vld [vmem:[#allocation11 + $0x500] sm:$0xff]
    %v557 = vld [vmem:[#allocation11 + $0x508] sm:$0xff]
    %v558 = vld [vmem:[#allocation11 + $0x510] sm:$0xff]
    %v559 = vld [vmem:[#allocation11 + $0x518] sm:$0xff]
    %v560 = vld [vmem:[#allocation11 + $0x520] sm:$0xff]
    %v561 = vld [vmem:[#allocation11 + $0x528] sm:$0xff]
    %v562 = vld [vmem:[#allocation11 + $0x530] sm:$0xff]
    %v563 = vld [vmem:[#allocation11 + $0x538] sm:$0xff]
    %v564 = vld [vmem:[#allocation11 + $0x540] sm:$0xff]
    %v565 = vld [vmem:[#allocation11 + $0x548] sm:$0xff]
    %v566 = vld [vmem:[#allocation11 + $0x550] sm:$0xff]
    %v567 = vld [vmem:[#allocation11 + $0x558] sm:$0xff]
    %v568 = vld [vmem:[#allocation11 + $0x560] sm:$0xff]
    %v569 = vld [vmem:[#allocation11 + $0x568] sm:$0xff]
    %v570 = vld [vmem:[#allocation11 + $0x570] sm:$0xff]
    %v571 = vld [vmem:[#allocation11 + $0x578] sm:$0xff]
    %v572 = vld [vmem:[#allocation11 + $0x580] sm:$0xff]
    %v573 = vld [vmem:[#allocation11 + $0x588] sm:$0xff]
    %v574 = vld [vmem:[#allocation11 + $0x590] sm:$0xff]
    %v575 = vld [vmem:[#allocation11 + $0x598] sm:$0xff]
    %v576 = vld [vmem:[#allocation11 + $0x5a0] sm:$0xff]
    %v577 = vld [vmem:[#allocation11 + $0x5a8] sm:$0xff]
    %v578 = vld [vmem:[#allocation11 + $0x5b0] sm:$0xff]
    %v579 = vld [vmem:[#allocation11 + $0x5b8] sm:$0xff]
    %v580 = vld [vmem:[#allocation11 + $0x5c0] sm:$0xff]
    %v581 = vld [vmem:[#allocation11 + $0x5c8] sm:$0xff]
    %v582 = vld [vmem:[#allocation11 + $0x5d0] sm:$0xff]
    %v583 = vld [vmem:[#allocation11 + $0x5d8] sm:$0xff]
    %v584 = vld [vmem:[#allocation11 + $0x5e0] sm:$0xff]
    %v585 = vld [vmem:[#allocation11 + $0x5e8] sm:$0xff]
    %v586 = vld [vmem:[#allocation11 + $0x5f0] sm:$0xff]
    %v587 = vld [vmem:[#allocation11 + $0x5f8] sm:$0xff]
    %v588 = vld [vmem:[#allocation11 + $0x600] sm:$0xff]
    %v589 = vld [vmem:[#allocation11 + $0x608] sm:$0xff]
    %v590 = vld [vmem:[#allocation11 + $0x610] sm:$0xff]
    %v591 = vld [vmem:[#allocation11 + $0x618] sm:$0xff]
    %v592 = vld [vmem:[#allocation11 + $0x620] sm:$0xff]
    %v593 = vld [vmem:[#allocation11 + $0x628] sm:$0xff]
    %v594 = vld [vmem:[#allocation11 + $0x630] sm:$0xff]
    %v595 = vld [vmem:[#allocation11 + $0x638] sm:$0xff]
    %v596 = vld [vmem:[#allocation11 + $0x640] sm:$0xff]
    %v597 = vld [vmem:[#allocation11 + $0x648] sm:$0xff]
    %v598 = vld [vmem:[#allocation11 + $0x650] sm:$0xff]
    %v599 = vld [vmem:[#allocation11 + $0x658] sm:$0xff]
    %v600 = vld [vmem:[#allocation11 + $0x660] sm:$0xff]
    %v601 = vld [vmem:[#allocation11 + $0x668] sm:$0xff]
    %v602 = vld [vmem:[#allocation11 + $0x670] sm:$0xff]
    %v603 = vld [vmem:[#allocation11 + $0x678] sm:$0xff]
    %v604 = vld [vmem:[#allocation11 + $0x680] sm:$0xff]
    %v605 = vld [vmem:[#allocation11 + $0x688] sm:$0xff]
    %v606 = vld [vmem:[#allocation11 + $0x690] sm:$0xff]
    %v607 = vld [vmem:[#allocation11 + $0x698] sm:$0xff]
    %v608 = vld [vmem:[#allocation11 + $0x6a0] sm:$0xff]
    %v609 = vld [vmem:[#allocation11 + $0x6a8] sm:$0xff]
    %v610 = vld [vmem:[#allocation11 + $0x6b0] sm:$0xff]
    %v611 = vld [vmem:[#allocation11 + $0x6b8] sm:$0xff]
    %v612 = vld [vmem:[#allocation11 + $0x6c0] sm:$0xff]
    %v613 = vld [vmem:[#allocation11 + $0x6c8] sm:$0xff]
    %v614 = vld [vmem:[#allocation11 + $0x6d0] sm:$0xff]
    %v615 = vld [vmem:[#allocation11 + $0x6d8] sm:$0xff]
    %v616 = vld [vmem:[#allocation11 + $0x6e0] sm:$0xff]
    %v617 = vld [vmem:[#allocation11 + $0x6e8] sm:$0xff]
    %v618 = vld [vmem:[#allocation11 + $0x6f0] sm:$0xff]
    %v619 = vld [vmem:[#allocation11 + $0x6f8] sm:$0xff]
    %v620 = vld [vmem:[%s8] sm:$0xff]
    %v622 = vlaneseq
    %v623 = vshrl.u32 %v622, 7
    %v624 = vsub.s32 0, %v623
    %v625 = vrot.slane %v620, %v624
    %v626 = vlaneseq
    %v627 = vshrl.u32 %v626, 7
    %v628 = vsub.s32 1, %v627
    %v629 = vrot.slane %v620, %v628
    %v630 = vlaneseq
    %v631 = vshrl.u32 %v630, 7
    %v632 = vsub.s32 2, %v631
    %v633 = vrot.slane %v620, %v632
    %v634 = vlaneseq
    %v635 = vshrl.u32 %v634, 7
    %v636 = vsub.s32 3, %v635
    %v637 = vrot.slane %v620, %v636
    %v638 = vlaneseq
    %v639 = vshrl.u32 %v638, 7
    %v640 = vsub.s32 4, %v639
    %v641 = vrot.slane %v620, %v640
    %v642 = vlaneseq
    %v643 = vshrl.u32 %v642, 7
    %v644 = vsub.s32 5, %v643
    %v645 = vrot.slane %v620, %v644
    %v646 = vlaneseq
    %v647 = vshrl.u32 %v646, 7
    %v648 = vsub.s32 6, %v647
    %v649 = vrot.slane %v620, %v648
    %657 = vmatprep.subr.mxu0 %v397
    %658 = vmatpush1.msra.mxu0 %v396
    %659 = vmatprep.subr.mxu0 %v404
    %660 = vmatpush1.msra.mxu0 %v403
    %661 = vmatprep.subr.mxu0 %v411
    %662 = vmatpush1.msra.mxu0 %v410
    %663 = vmatprep.subr.mxu0 %v418
    %664 = vmatpush1.msra.mxu0 %v417
    %665 = vmatprep.subr.mxu0 %v425
    %666 = vmatpush1.msra.mxu0 %v424
    %667 = vmatprep.subr.mxu0 %v432
    %668 = vmatpush1.msra.mxu0 %v431
    %669 = vmatprep.subr.mxu0 %v439
    %670 = vmatpush1.msra.mxu0 %v438
    %671 = vmatprep.subr.mxu0 %v446
    %672 = vmatpush1.msra.mxu0 %v445
    %673 = vmatprep.subr.mxu0 %v453
    %674 = vmatpush1.msra.mxu0 %v452
    %675 = vmatprep.subr.mxu0 %v460
    %676 = vmatpush1.msra.mxu0 %v459
    %677 = vmatprep.subr.mxu0 %v467
    %678 = vmatpush1.msra.mxu0 %v466
    %679 = vmatprep.subr.mxu0 %v474
    %680 = vmatpush1.msra.mxu0 %v473
    %681 = vmatprep.subr.mxu0 %v481
    %682 = vmatpush1.msra.mxu0 %v480
    %683 = vmatprep.subr.mxu0 %v488
    %684 = vmatpush1.msra.mxu0 %v487
    %685 = vmatprep.subr.mxu0 %v495
    %686 = vmatpush1.msra.mxu0 %v494
    %687 = vmatprep.subr.mxu0 %v502
    %688 = vmatpush1.msra.mxu0 %v501
    %689 = vmatprep.subr.mxu0 %v509
    %690 = vmatpush1.msra.mxu0 %v508
    %691 = vmatprep.subr.mxu0 %v516
    %692 = vmatpush1.msra.mxu0 %v515
    %693 = vmatprep.subr.mxu0 %v523
    %694 = vmatpush1.msra.mxu0 %v522
    %695 = vmatprep.subr.mxu0 %v530
    %696 = vmatpush1.msra.mxu0 %v529
    %697 = vmatprep.subr.mxu0 %v537
    %698 = vmatpush1.msra.mxu0 %v536
    %699 = vmatprep.subr.mxu0 %v544
    %700 = vmatpush1.msra.mxu0 %v543
    %701 = vmatprep.subr.mxu0 %v551
    %702 = vmatpush1.msra.mxu0 %v550
    %703 = vmatprep.subr.mxu0 %v558
    %704 = vmatpush1.msra.mxu0 %v557
    %705 = vmatprep.subr.mxu0 %v565
    %706 = vmatpush1.msra.mxu0 %v564
    %707 = vmatprep.subr.mxu0 %v572
    %708 = vmatpush1.msra.mxu0 %v571
    %709 = vmatprep.subr.mxu0 %v579
    %710 = vmatpush1.msra.mxu0 %v578
    %711 = vmatprep.subr.mxu0 %v586
    %712 = vmatpush1.msra.mxu0 %v585
    %713 = vmatprep.subr.mxu0 %v593
    %714 = vmatpush1.msra.mxu0 %v592
    %715 = vmatprep.subr.mxu0 %v600
    %716 = vmatpush1.msra.mxu0 %v599
    %717 = vmatprep.subr.mxu0 %v607
    %718 = vmatpush1.msra.mxu0 %v606
    %719 = vmatprep.subr.mxu0 %v614
    %720 = vmatpush1.msra.mxu0 %v613
    %721 = vmatprep.mubr.f32.mxu0 %v395
    %722 = vmatmul.mubr.f32.gmra.mrb[0].mxu0 %v394
    %v723 = vpop.f32.mrb[0].mxu0
    %v724 = vadd.f32 %v625, %v723
    %v725 = vpop.f32.mrb[0].mxu0
    %v726 = vadd.f32 %v629, %v725
    %727 = vdwg.mxu0
    %728 = vmatprep.subr.mxu0 %v399
    %729 = vmatpush1.msra.mxu0 %v398
    %730 = vmatprep.subr.mxu0 %v406
    %731 = vmatpush1.msra.mxu0 %v405
    %732 = vmatprep.subr.mxu0 %v413
    %733 = vmatpush1.msra.mxu0 %v412
    %734 = vmatprep.subr.mxu0 %v420
    %735 = vmatpush1.msra.mxu0 %v419
    %736 = vmatprep.subr.mxu0 %v427
    %737 = vmatpush1.msra.mxu0 %v426
    %738 = vmatprep.subr.mxu0 %v434
    %739 = vmatpush1.msra.mxu0 %v433
    %740 = vmatprep.subr.mxu0 %v441
    %741 = vmatpush1.msra.mxu0 %v440
    %742 = vmatprep.subr.mxu0 %v448
    %743 = vmatpush1.msra.mxu0 %v447
    %744 = vmatprep.subr.mxu0 %v455
    %745 = vmatpush1.msra.mxu0 %v454
    %746 = vmatprep.subr.mxu0 %v462
    %747 = vmatpush1.msra.mxu0 %v461
    %748 = vmatprep.subr.mxu0 %v469
    %749 = vmatpush1.msra.mxu0 %v468
    %750 = vmatprep.subr.mxu0 %v476
    %751 = vmatpush1.msra.mxu0 %v475
    %752 = vmatprep.subr.mxu0 %v483
    %753 = vmatpush1.msra.mxu0 %v482
    %754 = vmatprep.subr.mxu0 %v490
    %755 = vmatpush1.msra.mxu0 %v489
    %756 = vmatprep.subr.mxu0 %v497
    %757 = vmatpush1.msra.mxu0 %v496
    %758 = vmatprep.subr.mxu0 %v504
    %759 = vmatpush1.msra.mxu0 %v503
    %760 = vmatprep.subr.mxu0 %v511
    %761 = vmatpush1.msra.mxu0 %v510
    %762 = vmatprep.subr.mxu0 %v518
    %763 = vmatpush1.msra.mxu0 %v517
    %764 = vmatprep.subr.mxu0 %v525
    %765 = vmatpush1.msra.mxu0 %v524
    %766 = vmatprep.subr.mxu0 %v532
    %767 = vmatpush1.msra.mxu0 %v531
    %768 = vmatprep.subr.mxu0 %v539
    %769 = vmatpush1.msra.mxu0 %v538
    %770 = vmatprep.subr.mxu0 %v546
    %771 = vmatpush1.msra.mxu0 %v545
    %772 = vmatprep.subr.mxu0 %v553
    %773 = vmatpush1.msra.mxu0 %v552
    %774 = vmatprep.subr.mxu0 %v560
    %775 = vmatpush1.msra.mxu0 %v559
    %776 = vmatprep.subr.mxu0 %v567
    %777 = vmatpush1.msra.mxu0 %v566
    %778 = vmatprep.subr.mxu0 %v574
    %779 = vmatpush1.msra.mxu0 %v573
    %780 = vmatprep.subr.mxu0 %v581
    %781 = vmatpush1.msra.mxu0 %v580
    %782 = vmatprep.subr.mxu0 %v588
    %783 = vmatpush1.msra.mxu0 %v587
    %784 = vmatprep.subr.mxu0 %v595
    %785 = vmatpush1.msra.mxu0 %v594
    %786 = vmatprep.subr.mxu0 %v602
    %787 = vmatpush1.msra.mxu0 %v601
    %788 = vmatprep.subr.mxu0 %v609
    %789 = vmatpush1.msra.mxu0 %v608
    %790 = vmatprep.subr.mxu0 %v616
    %791 = vmatpush1.msra.mxu0 %v615
    %792 = vmatprep.mubr.f32.mxu0 %v395
    %793 = vmatmul.mubr.f32.gmra.mrb[0].mxu0 %v394
    %v794 = vpop.f32.mrb[0].mxu0
    %v795 = vadd.f32 %v633, %v794
    %v796 = vpop.f32.mrb[0].mxu0
    %v797 = vadd.f32 %v637, %v796
    %798 = vdwg.mxu0
    %799 = vmatprep.subr.mxu0 %v401
    %800 = vmatpush1.msra.mxu0 %v400
    %801 = vmatprep.subr.mxu0 %v408
    %802 = vmatpush1.msra.mxu0 %v407
    %803 = vmatprep.subr.mxu0 %v415
    %804 = vmatpush1.msra.mxu0 %v414
    %805 = vmatprep.subr.mxu0 %v422
    %806 = vmatpush1.msra.mxu0 %v421
    %807 = vmatprep.subr.mxu0 %v429
    %808 = vmatpush1.msra.mxu0 %v428
    %809 = vmatprep.subr.mxu0 %v436
    %810 = vmatpush1.msra.mxu0 %v435
    %811 = vmatprep.subr.mxu0 %v443
    %812 = vmatpush1.msra.mxu0 %v442
    %813 = vmatprep.subr.mxu0 %v450
    %814 = vmatpush1.msra.mxu0 %v449
    %815 = vmatprep.subr.mxu0 %v457
    %816 = vmatpush1.msra.mxu0 %v456
    %817 = vmatprep.subr.mxu0 %v464
    %818 = vmatpush1.msra.mxu0 %v463
    %819 = vmatprep.subr.mxu0 %v471
    %820 = vmatpush1.msra.mxu0 %v470
    %821 = vmatprep.subr.mxu0 %v478
    %822 = vmatpush1.msra.mxu0 %v477
    %823 = vmatprep.subr.mxu0 %v485
    %824 = vmatpush1.msra.mxu0 %v484
    %825 = vmatprep.subr.mxu0 %v492
    %826 = vmatpush1.msra.mxu0 %v491
    %827 = vmatprep.subr.mxu0 %v499
    %828 = vmatpush1.msra.mxu0 %v498
    %829 = vmatprep.subr.mxu0 %v506
    %830 = vmatpush1.msra.mxu0 %v505
    %831 = vmatprep.subr.mxu0 %v513
    %832 = vmatpush1.msra.mxu0 %v512
    %833 = vmatprep.subr.mxu0 %v520
    %834 = vmatpush1.msra.mxu0 %v519
    %835 = vmatprep.subr.mxu0 %v527
    %836 = vmatpush1.msra.mxu0 %v526
    %837 = vmatprep.subr.mxu0 %v534
    %838 = vmatpush1.msra.mxu0 %v533
    %839 = vmatprep.subr.mxu0 %v541
    %840 = vmatpush1.msra.mxu0 %v540
    %841 = vmatprep.subr.mxu0 %v548
    %842 = vmatpush1.msra.mxu0 %v547
    %843 = vmatprep.subr.mxu0 %v555
    %844 = vmatpush1.msra.mxu0 %v554
    %845 = vmatprep.subr.mxu0 %v562
    %846 = vmatpush1.msra.mxu0 %v561
    %847 = vmatprep.subr.mxu0 %v569
    %848 = vmatpush1.msra.mxu0 %v568
    %849 = vmatprep.subr.mxu0 %v576
    %850 = vmatpush1.msra.mxu0 %v575
    %851 = vmatprep.subr.mxu0 %v583
    %852 = vmatpush1.msra.mxu0 %v582
    %853 = vmatprep.subr.mxu0 %v590
    %854 = vmatpush1.msra.mxu0 %v589
    %855 = vmatprep.subr.mxu0 %v597
    %856 = vmatpush1.msra.mxu0 %v596
    %857 = vmatprep.subr.mxu0 %v604
    %858 = vmatpush1.msra.mxu0 %v603
    %859 = vmatprep.subr.mxu0 %v611
    %860 = vmatpush1.msra.mxu0 %v610
    %861 = vmatprep.subr.mxu0 %v618
    %862 = vmatpush1.msra.mxu0 %v617
    %863 = vmatprep.mubr.f32.mxu0 %v395
    %864 = vmatmul.mubr.f32.gmra.mrb[0].mxu0 %v394
    %v865 = vpop.f32.mrb[0].mxu0
    %v866 = vadd.f32 %v641, %v865
    %v867 = vpop.f32.mrb[0].mxu0
    %v868 = vadd.f32 %v645, %v867
    %869 = vdwg.mxu0
    %870 = vmatprep.subr.mxu0 0.0
    %871 = vmatpush1.msra.mxu0 %v402
    %872 = vmatprep.subr.mxu0 0.0
    %873 = vmatpush1.msra.mxu0 %v409
    %874 = vmatprep.subr.mxu0 0.0
    %875 = vmatpush1.msra.mxu0 %v416
    %876 = vmatprep.subr.mxu0 0.0
    %877 = vmatpush1.msra.mxu0 %v423
    %878 = vmatprep.subr.mxu0 0.0
    %879 = vmatpush1.msra.mxu0 %v430
    %880 = vmatprep.subr.mxu0 0.0
    %881 = vmatpush1.msra.mxu0 %v437
    %882 = vmatprep.subr.mxu0 0.0
    %883 = vmatpush1.msra.mxu0 %v444
    %884 = vmatprep.subr.mxu0 0.0
    %885 = vmatpush1.msra.mxu0 %v451
    %886 = vmatprep.subr.mxu0 0.0
    %887 = vmatpush1.msra.mxu0 %v458
    %888 = vmatprep.subr.mxu0 0.0
    %889 = vmatpush1.msra.mxu0 %v465
    %890 = vmatprep.subr.mxu0 0.0
    %891 = vmatpush1.msra.mxu0 %v472
    %892 = vmatprep.subr.mxu0 0.0
    %893 = vmatpush1.msra.mxu0 %v479
    %894 = vmatprep.subr.mxu0 0.0
    %895 = vmatpush1.msra.mxu0 %v486
    %896 = vmatprep.subr.mxu0 0.0
    %897 = vmatpush1.msra.mxu0 %v493
    %898 = vmatprep.subr.mxu0 0.0
    %899 = vmatpush1.msra.mxu0 %v500
    %900 = vmatprep.subr.mxu0 0.0
    %901 = vmatpush1.msra.mxu0 %v507
    %902 = vmatprep.subr.mxu0 0.0
    %903 = vmatpush1.msra.mxu0 %v514
    %904 = vmatprep.subr.mxu0 0.0
    %905 = vmatpush1.msra.mxu0 %v521
    %906 = vmatprep.subr.mxu0 0.0
    %907 = vmatpush1.msra.mxu0 %v528
    %908 = vmatprep.subr.mxu0 0.0
    %909 = vmatpush1.msra.mxu0 %v535
    %910 = vmatprep.subr.mxu0 0.0
    %911 = vmatpush1.msra.mxu0 %v542
    %912 = vmatprep.subr.mxu0 0.0
    %913 = vmatpush1.msra.mxu0 %v549
    %914 = vmatprep.subr.mxu0 0.0
    %915 = vmatpush1.msra.mxu0 %v556
    %916 = vmatprep.subr.mxu0 0.0
    %917 = vmatpush1.msra.mxu0 %v563
    %918 = vmatprep.subr.mxu0 0.0
    %919 = vmatpush1.msra.mxu0 %v570
    %920 = vmatprep.subr.mxu0 0.0
    %921 = vmatpush1.msra.mxu0 %v577
    %922 = vmatprep.subr.mxu0 0.0
    %923 = vmatpush1.msra.mxu0 %v584
    %924 = vmatprep.subr.mxu0 0.0
    %925 = vmatpush1.msra.mxu0 %v591
    %926 = vmatprep.subr.mxu0 0.0
    %927 = vmatpush1.msra.mxu0 %v598
    %928 = vmatprep.subr.mxu0 0.0
    %929 = vmatpush1.msra.mxu0 %v605
    %930 = vmatprep.subr.mxu0 0.0
    %931 = vmatpush1.msra.mxu0 %v612
    %932 = vmatprep.subr.mxu0 0.0
    %933 = vmatpush1.msra.mxu0 %v619
    %934 = vmatprep.mubr.f32.mxu0 %v395
    %935 = vmatmul.mubr.f32.gmra.mrb[0].mxu0 %v394
    %v936 = vpop.f32.mrb[0].mxu0
    %v937 = vadd.f32 %v649, %v936
    %v938 = vpop.f32.mrb[0].mxu0
    %939 = vdwg.mxu0
    %v940 = vxor.u32 %v724, 2147483648
    %v941 = vxor.u32 %v726, 2147483648
    %v942 = vxor.u32 %v795, 2147483648
    %v943 = vxor.u32 %v797, 2147483648
    %v944 = vxor.u32 %v866, 2147483648
    %v945 = vxor.u32 %v868, 2147483648
    %v946 = vxor.u32 %v937, 2147483648
    %v947 = vmul.f32 %v940, 1.442695
    %v948 = vpow.pop %v947
    %v949 = vmul.f32 %v941, 1.442695
    %v950 = vpow.pop %v949
    %v951 = vmul.f32 %v942, 1.442695
    %v952 = vpow.pop %v951
    %v953 = vmul.f32 %v943, 1.442695
    %v954 = vpow.pop %v953
    %v955 = vmul.f32 %v944, 1.442695
    %v956 = vpow.pop %v955
    %v957 = vmul.f32 %v945, 1.442695
    %v958 = vpow.pop %v957
    %v959 = vmul.f32 %v946, 1.442695
    %v960 = vpow.pop %v959
    %v961 = vadd.f32 %v948, 1.0
    %v962 = vadd.f32 %v950, 1.0
    %v963 = vadd.f32 %v952, 1.0
    %v964 = vadd.f32 %v954, 1.0
    %v965 = vadd.f32 %v956, 1.0
    %v966 = vadd.f32 %v958, 1.0
    %v967 = vadd.f32 %v960, 1.0
    %v968 = vrcp.pop %v961
    %v969 = vmul.f32 1.0, %v968
    %v970 = vrcp.pop %v962
    %v971 = vmul.f32 1.0, %v970
    %v972 = vrcp.pop %v963
    %v973 = vmul.f32 1.0, %v972
    %v974 = vrcp.pop %v964
    %v975 = vmul.f32 1.0, %v974
    %v976 = vrcp.pop %v965
    %v977 = vmul.f32 1.0, %v976
    %v978 = vrcp.pop %v966
    %v979 = vmul.f32 1.0, %v978
    %v980 = vrcp.pop %v967
    %v981 = vmul.f32 1.0, %v980
    %982 = vst [vmem:[#allocation13] sm:$0xff] %v969
    %983 = vst [vmem:[#allocation13 + $0x8] sm:$0xff] %v971
    %984 = vst [vmem:[#allocation13 + $0x10] sm:$0xff] %v973
    %985 = vst [vmem:[#allocation13 + $0x18] sm:$0xff] %v975
    %986 = vst [vmem:[#allocation13 + $0x20] sm:$0xff] %v977
    %987 = vst [vmem:[#allocation13 + $0x28] sm:$0xff] %v979
    %988 = vst [vmem:[#allocation13 + $0x30] sm:$0xff] %v981
    // Predicated region
    $region62: #{tpu_custom_call.1} parent=1 // pred_check
      _
    $region63: #{tpu_custom_call.1} parent=1 // pred_check_branch
      %990 = sbr.rel (0) target = $region65
    $region64: #{tpu_custom_call.1} parent=1 // pred_region
      %s992 = ssub.s32 896, 896
      %993 = vsyncadd [#allocation4], %s992
      %s995 = sshll.u32 [#allocation13], 4
      %s996 = int_to_ptr.vmem [resolvable:$true] %s995
      %998 = dma.vmem_to_hbm [thread:$0]  %s996, 896, %s9, [#allocation4]
    $region65: #{tpu_custom_call.1} parent=1 // pred_fallthru
      _
    // Predicated region
    $region66: #{tpu_custom_call.1} parent=1 // pred_check
      _
    $region67: #{tpu_custom_call.1} parent=1 // pred_check_branch
      %1000 = sbr.rel (0) target = $region69
    $region68: #{tpu_custom_call.1} parent=1 // pred_region
      %1001 = dma.done [#allocation4], 896
    $region69: #{tpu_custom_call.1} parent=1 // pred_fallthru
      _
    %1002 = vsyncpa [#allocation3], 1
    %1003 = vsyncpa [#allocation6], 1
    %1004 = vsyncpa [#allocation9], 1
    %1005 = vsyncpa [#allocation12], 1
    %1006 = vsyncpa [#allocation4], 1

</llo_original>
